<compile_context>
chip_gen: v5e
topology: v5e:2x2
jax: 0.10.0
libtpu: 0.0.40
codegen_flags: <defaults>
</compile_context>

<pallas_src>
import jax
import jax.numpy as jnp
from jax.experimental import pallas as pl
from jax.experimental.pallas import tpu as pltpu

LANE = 128  # TPU lane width


def mlp_kernel(alpha_ref,                      # SMEM: (3,) PReLU alphas
               x_ref,                          # (F, TILE_B)   feature-major activations
               w1_ref, b1_ref,                 # (H1, F), (H1, 1)  BN-folded
               w2_ref, b2_ref,                 # (H2, H1), (H2, 1)
               w3_ref, b3_ref,                 # (H3, H2), (H3, 1)
               w4_ref, b4_ref,                 # (T, H3), (T, 1)
               out_ref):                       # (T, TILE_B)
    # Hoist scalar reads out of the layer closure.
    a1 = alpha_ref[0]
    a2 = alpha_ref[1]
    a3 = alpha_ref[2]

    def layer(h, w_ref, b_ref, a):
        # z = W @ h + b :: (out, in) @ (in, tile_b) -> (out, tile_b); bias lane-broadcasts.
        z = jnp.dot(w_ref[...], h, preferred_element_type=jnp.float32) + b_ref[...]
        # Dropout: identity in eval mode. PReLU (scalar alpha), 2-op select form.
        return jnp.where(z >= 0.0, z, a * z)

    h = layer(x_ref[...], w1_ref, b1_ref, a1)
    h = layer(h, w2_ref, b2_ref, a2)
    h = layer(h, w3_ref, b3_ref, a3)
    # Final Linear (no BN / activation); (T, tile_b) store is lane-dense.
    out_ref[...] = (jnp.dot(w4_ref[...], h, preferred_element_type=jnp.float32)
                    + b4_ref[...])


def _bn_fold_into_linear(w, b, gamma, beta, mean, var, eps=1e-5):
    """Fold eval-mode BatchNorm1d into the preceding Linear (w: (in, out), b: (out,))."""
    scale = gamma / jnp.sqrt(var + eps)                 # (out,)
    w_f = w * scale[None, :]
    b_f = (b - mean) * scale + beta
    return w_f, b_f


def _batch_tiling(B, tile_b_req):
    """Pick (tile_b, grid_b, b_pad): batch axis lane-dense (mult of 128), as few grid
    steps as possible, but >=2 even steps when the batch allows so v7x's two
    TensorCores both get work under dimension_semantics=("parallel",)."""
    b_lanes = pl.cdiv(B, LANE) * LANE
    tile_b = max(LANE, min((int(tile_b_req) // LANE) * LANE, b_lanes))
    grid_b = pl.cdiv(b_lanes, tile_b)
    if grid_b == 1 and b_lanes >= 2 * LANE:
        tile_b = pl.cdiv(b_lanes // LANE, 2) * LANE
        grid_b = 2
    return tile_b, grid_b, grid_b * tile_b


def tabular_nn_forward(cont_x, cate_x, params, *, tile_b=2048):
    """cont_x: (B, F) float32. cate_x accepted but unused (matches TabularNN.forward)."""
    del cate_x  # unused by TabularNN.forward
    B, F = cont_x.shape
    T = params["w4"].shape[1]

    # --- Fold BatchNorm into the Linear weights/bias (eval-mode, exact rewrite). ---
    w1, b1 = _bn_fold_into_linear(params["w1"], params["b1"],
                                  params["bn1_g"], params["bn1_b"],
                                  params["bn1_m"], params["bn1_v"])
    w2, b2 = _bn_fold_into_linear(params["w2"], params["b2"],
                                  params["bn2_g"], params["bn2_b"],
                                  params["bn2_m"], params["bn2_v"])
    w3, b3 = _bn_fold_into_linear(params["w3"], params["b3"],
                                  params["bn3_g"], params["bn3_b"],
                                  params["bn3_m"], params["bn3_v"])

    # --- Feature-major operands: W as (out, in), bias as (out, 1). ---
    w1t, w2t, w3t = w1.T, w2.T, w3.T
    w4t = params["w4"].T.astype(jnp.float32)
    b4 = params["b4"].astype(jnp.float32)

    alphas = jnp.stack([params["a1"], params["a2"], params["a3"]]).astype(jnp.float32)

    # --- Batch tiling (batch is the lane axis now). ---
    tile, grid_b, b_pad = _batch_tiling(B, tile_b)
    xt = cont_x.astype(jnp.float32).T                    # (F, B)
    if b_pad != B:
        xt = jnp.zeros((F, b_pad), jnp.float32).at[:, :B].set(xt)

    smem = pl.BlockSpec(memory_space=pltpu.MemorySpace.SMEM)

    def resident(shape):
        # Full-array block, constant index -> stays VMEM-resident across grid steps.
        return pl.BlockSpec(shape, lambda i: tuple(0 for _ in shape))

    args = (
        alphas,
        xt,
        w1t, b1[:, None],
        w2t, b2[:, None],
        w3t, b3[:, None],
        w4t, b4[:, None],
    )

    in_specs = [
        smem,
        pl.BlockSpec((F, tile), lambda i: (0, i)),
        resident(w1t.shape), resident((w1t.shape[0], 1)),
        resident(w2t.shape), resident((w2t.shape[0], 1)),
        resident(w3t.shape), resident((w3t.shape[0], 1)),
        resident(w4t.shape), resident((w4t.shape[0], 1)),
    ]

    out_fm = pl.pallas_call(
        mlp_kernel,
        out_shape=jax.ShapeDtypeStruct((T, b_pad), jnp.float32),
        grid=(grid_b,),
        in_specs=in_specs,
        out_specs=pl.BlockSpec((T, tile), lambda i: (0, i)),
        compiler_params=pltpu.CompilerParams(
            dimension_semantics=("parallel",),        # shards batch tiles across TCs on v7x
        ),
    )(*args)

    return out_fm[:, :B].T                              # (B, T)


def init_params(key, num_features, h1, h2, h3, n_targets):
    """Deterministic parameter init (PyTorch-style uniform for Linear; random-ish BN stats)."""
    ks = jax.random.split(key, 16)

    def linear(kw, kb, fan_in, fan_out):
        bound = 1.0 / jnp.sqrt(fan_in)
        w = jax.random.uniform(kw, (fan_in, fan_out), jnp.float32, -bound, bound)
        b = jax.random.uniform(kb, (fan_out,), jnp.float32, -bound, bound)
        return w, b

    w1, b1 = linear(ks[0], ks[1], num_features, h1)
    w2, b2 = linear(ks[2], ks[3], h1, h2)
    w3, b3 = linear(ks[4], ks[5], h2, h3)
    w4, b4 = linear(ks[6], ks[7], h3, n_targets)

    def bn(kg, kb, km, kv, dim):
        g = 1.0 + 0.1 * jax.random.normal(kg, (dim,), jnp.float32)
        b = 0.1 * jax.random.normal(kb, (dim,), jnp.float32)
        m = 0.1 * jax.random.normal(km, (dim,), jnp.float32)
        v = jnp.abs(1.0 + 0.1 * jax.random.normal(kv, (dim,), jnp.float32))
        return g, b, m, v

    bn1 = bn(ks[8], ks[9], ks[10], ks[11], h1)
    bn2 = bn(ks[12], ks[13], ks[14], ks[15], h2)
    k2 = jax.random.split(ks[15], 4)
    bn3 = bn(k2[0], k2[1], k2[2], k2[3], h3)

    return dict(
        w1=w1, b1=b1, w2=w2, b2=b2, w3=w3, b3=b3, w4=w4, b4=b4,
        bn1_g=bn1[0], bn1_b=bn1[1], bn1_m=bn1[2], bn1_v=bn1[3],
        bn2_g=bn2[0], bn2_b=bn2[1], bn2_m=bn2[2], bn2_v=bn2[3],
        bn3_g=bn3[0], bn3_b=bn3[1], bn3_m=bn3[2], bn3_v=bn3[3],
        a1=jnp.float32(0.25), a2=jnp.float32(0.25), a3=jnp.float32(0.25),  # PReLU default init
    )


def reference_forward(cont_x, params):
    """Pure-JAX reference (BN applied as a separate eval-mode affine, like PyTorch)."""
    def bn_affine(z, g, b, m, v, eps=1e-5):
        s = g / jnp.sqrt(v + eps)
        return z * s + (b - m * s)

    def layer(h, w, b, bn_p, a):
        z = bn_affine(h @ w + b, *bn_p)
        return jnp.where(z >= 0, z, a * z)

    h = layer(cont_x, params["w1"], params["b1"],
              (params["bn1_g"], params["bn1_b"], params["bn1_m"], params["bn1_v"]), params["a1"])
    h = layer(h, params["w2"], params["b2"],
              (params["bn2_g"], params["bn2_b"], params["bn2_m"], params["bn2_v"]), params["a2"])
    h = layer(h, params["w3"], params["b3"],
              (params["bn3_g"], params["bn3_b"], params["bn3_m"], params["bn3_v"]), params["a3"])
    return h @ params["w4"] + params["b4"]


if __name__ == "__main__":
    # Config implied by the module: cfg.num_features, hidden sizes, target_cols.
    B, F = 512, 16
    H1, H2, H3, T = 32, 64, 32, 8
    TILE_B = 512  # request one big tile; the wrapper splits it into 2 even steps for v7x's 2 TCs

    key = jax.random.PRNGKey(0)
    kx, kc, kp = jax.random.split(key, 3)
    cont_x = jax.random.normal(kx, (B, F), jnp.float32)
    cate_x = jax.random.randint(kc, (B, 4), 0, 10)  # unused by forward, kept for signature parity
    params = init_params(kp, F, H1, H2, H3, T)

    out = tabular_nn_forward(cont_x, cate_x, params, tile_b=TILE_B)
    out = jax.block_until_ready(out)

    ref = reference_forward(cont_x, params)
    assert out.shape == (B, T)
    assert jnp.allclose(out, ref, atol=1e-4, rtol=1e-4), "mismatch vs pure-JAX reference"

    # Also exercise a batch that isn't a multiple of the tile (padding path, 1-step grid).
    out_small = tabular_nn_forward(cont_x[:13], cate_x[:13], params, tile_b=TILE_B)
    out_small = jax.block_until_ready(out_small)
    assert out_small.shape == (13, T)
    assert jnp.allclose(out_small, ref[:13], atol=1e-4, rtol=1e-4), "mismatch on padded batch"

    print("KERNEL_OK")
</pallas_src>

<mosaic_0001>
module attributes {stable_mosaic.version = 11 : i64} {
  func.func @mlp_kernel(%arg0: i32, %arg1: memref<3xf32, #tpu.memory_space<smem>>, %arg2: memref<16x256xf32, #tpu.memory_space<vmem>>, %arg3: memref<32x16xf32, #tpu.memory_space<vmem>>, %arg4: memref<32x1xf32, #tpu.memory_space<vmem>>, %arg5: memref<64x32xf32, #tpu.memory_space<vmem>>, %arg6: memref<64x1xf32, #tpu.memory_space<vmem>>, %arg7: memref<32x64xf32, #tpu.memory_space<vmem>>, %arg8: memref<32x1xf32, #tpu.memory_space<vmem>>, %arg9: memref<8x32xf32, #tpu.memory_space<vmem>>, %arg10: memref<8x1xf32, #tpu.memory_space<vmem>>, %arg11: memref<8x256xf32, #tpu.memory_space<vmem>>) attributes {dimension_semantics = [#tpu.dimension_semantics<parallel>], iteration_bounds = array<i64: 2>, scalar_prefetch = 0 : i64, scratch_operands = 0 : i64, tpu.core_type = #tpu.core_type<tc>, window_params = [{transform_indices = @transform_0, window_bounds = array<i64: 3>}, {transform_indices = @transform_1, window_bounds = array<i64: 16, 256>}, {pipeline_mode = #tpu.pipeline_mode<synchronous>, transform_indices = @transform_2, window_bounds = array<i64: 32, 16>}, {pipeline_mode = #tpu.pipeline_mode<synchronous>, transform_indices = @transform_3, window_bounds = array<i64: 32, 1>}, {pipeline_mode = #tpu.pipeline_mode<synchronous>, transform_indices = @transform_4, window_bounds = array<i64: 64, 32>}, {pipeline_mode = #tpu.pipeline_mode<synchronous>, transform_indices = @transform_5, window_bounds = array<i64: 64, 1>}, {pipeline_mode = #tpu.pipeline_mode<synchronous>, transform_indices = @transform_6, window_bounds = array<i64: 32, 64>}, {pipeline_mode = #tpu.pipeline_mode<synchronous>, transform_indices = @transform_7, window_bounds = array<i64: 32, 1>}, {pipeline_mode = #tpu.pipeline_mode<synchronous>, transform_indices = @transform_8, window_bounds = array<i64: 8, 32>}, {pipeline_mode = #tpu.pipeline_mode<synchronous>, transform_indices = @transform_9, window_bounds = array<i64: 8, 1>}, {transform_indices = @transform_10, window_bounds = array<i64: 8, 256>}]} {
    %c0 = arith.constant 0 : index
    %0 = memref.load %arg1[%c0] : memref<3xf32, #tpu.memory_space<smem>>
    %c1 = arith.constant 1 : index
    %1 = memref.load %arg1[%c1] : memref<3xf32, #tpu.memory_space<smem>>
    %c2 = arith.constant 2 : index
    %2 = memref.load %arg1[%c2] : memref<3xf32, #tpu.memory_space<smem>>
    %c0_0 = arith.constant 0 : index
    %c0_1 = arith.constant 0 : index
    %3 = vector.load %arg2[%c0_0, %c0_1] : memref<16x256xf32, #tpu.memory_space<vmem>>, vector<16x256xf32>
    %c0_2 = arith.constant 0 : index
    %c0_3 = arith.constant 0 : index
    %4 = vector.load %arg3[%c0_2, %c0_3] : memref<32x16xf32, #tpu.memory_space<vmem>>, vector<32x16xf32>
    %cst = arith.constant dense<0.000000e+00> : vector<32x256xf32>
    %5 = tpu.matmul %4, %3, %cst {dimension_numbers = #tpu.dot_dimension_numbers<[1], [0], [0], [1], [0, 0, 1, 1], [], []>} : vector<32x16xf32>, vector<16x256xf32>, vector<32x256xf32> -> vector<32x256xf32>
    %c0_4 = arith.constant 0 : index
    %c0_5 = arith.constant 0 : index
    %6 = vector.load %arg4[%c0_4, %c0_5] : memref<32x1xf32, #tpu.memory_space<vmem>>, vector<32x1xf32>
    %7 = vector.broadcast %6 : vector<32x1xf32> to vector<32x256xf32>
    %8 = arith.addf %5, %7 : vector<32x256xf32>
    %cst_6 = arith.constant 0.000000e+00 : f32
    %9 = vector.broadcast %cst_6 : f32 to vector<32x256xf32>
    %10 = arith.cmpf oge, %8, %9 : vector<32x256xf32>
    %11 = vector.broadcast %0 : f32 to vector<32x256xf32>
    %12 = arith.mulf %11, %8 : vector<32x256xf32>
    %13 = arith.select %10, %8, %12 : vector<32x256xi1>, vector<32x256xf32>
    %c0_7 = arith.constant 0 : index
    %c0_8 = arith.constant 0 : index
    %14 = vector.load %arg5[%c0_7, %c0_8] : memref<64x32xf32, #tpu.memory_space<vmem>>, vector<64x32xf32>
    %cst_9 = arith.constant dense<0.000000e+00> : vector<64x256xf32>
    %15 = tpu.matmul %14, %13, %cst_9 {dimension_numbers = #tpu.dot_dimension_numbers<[1], [0], [0], [1], [0, 0, 1, 1], [], []>} : vector<64x32xf32>, vector<32x256xf32>, vector<64x256xf32> -> vector<64x256xf32>
    %c0_10 = arith.constant 0 : index
    %c0_11 = arith.constant 0 : index
    %16 = vector.load %arg6[%c0_10, %c0_11] : memref<64x1xf32, #tpu.memory_space<vmem>>, vector<64x1xf32>
    %17 = vector.broadcast %16 : vector<64x1xf32> to vector<64x256xf32>
    %18 = arith.addf %15, %17 : vector<64x256xf32>
    %cst_12 = arith.constant 0.000000e+00 : f32
    %19 = vector.broadcast %cst_12 : f32 to vector<64x256xf32>
    %20 = arith.cmpf oge, %18, %19 : vector<64x256xf32>
    %21 = vector.broadcast %1 : f32 to vector<64x256xf32>
    %22 = arith.mulf %21, %18 : vector<64x256xf32>
    %23 = arith.select %20, %18, %22 : vector<64x256xi1>, vector<64x256xf32>
    %c0_13 = arith.constant 0 : index
    %c0_14 = arith.constant 0 : index
    %24 = vector.load %arg7[%c0_13, %c0_14] : memref<32x64xf32, #tpu.memory_space<vmem>>, vector<32x64xf32>
    %cst_15 = arith.constant dense<0.000000e+00> : vector<32x256xf32>
    %25 = tpu.matmul %24, %23, %cst_15 {dimension_numbers = #tpu.dot_dimension_numbers<[1], [0], [0], [1], [0, 0, 1, 1], [], []>} : vector<32x64xf32>, vector<64x256xf32>, vector<32x256xf32> -> vector<32x256xf32>
    %c0_16 = arith.constant 0 : index
    %c0_17 = arith.constant 0 : index
    %26 = vector.load %arg8[%c0_16, %c0_17] : memref<32x1xf32, #tpu.memory_space<vmem>>, vector<32x1xf32>
    %27 = vector.broadcast %26 : vector<32x1xf32> to vector<32x256xf32>
    %28 = arith.addf %25, %27 : vector<32x256xf32>
    %cst_18 = arith.constant 0.000000e+00 : f32
    %29 = vector.broadcast %cst_18 : f32 to vector<32x256xf32>
    %30 = arith.cmpf oge, %28, %29 : vector<32x256xf32>
    %31 = vector.broadcast %2 : f32 to vector<32x256xf32>
    %32 = arith.mulf %31, %28 : vector<32x256xf32>
    %33 = arith.select %30, %28, %32 : vector<32x256xi1>, vector<32x256xf32>
    %c0_19 = arith.constant 0 : index
    %c0_20 = arith.constant 0 : index
    %34 = vector.load %arg9[%c0_19, %c0_20] : memref<8x32xf32, #tpu.memory_space<vmem>>, vector<8x32xf32>
    %cst_21 = arith.constant dense<0.000000e+00> : vector<8x256xf32>
    %35 = tpu.matmul %34, %33, %cst_21 {dimension_numbers = #tpu.dot_dimension_numbers<[1], [0], [0], [1], [0, 0, 1, 1], [], []>} : vector<8x32xf32>, vector<32x256xf32>, vector<8x256xf32> -> vector<8x256xf32>
    %c0_22 = arith.constant 0 : index
    %c0_23 = arith.constant 0 : index
    %36 = vector.load %arg10[%c0_22, %c0_23] : memref<8x1xf32, #tpu.memory_space<vmem>>, vector<8x1xf32>
    %37 = vector.broadcast %36 : vector<8x1xf32> to vector<8x256xf32>
    %38 = arith.addf %35, %37 : vector<8x256xf32>
    %c0_24 = arith.constant 0 : index
    %c0_25 = arith.constant 0 : index
    %39 = vector.load %arg11[%c0_24, %c0_25] : memref<8x256xf32, #tpu.memory_space<vmem>>, vector<8x256xf32>
    tpu.vector_store %arg11[%c0_24, %c0_25], %38 {strides = array<i32>} : memref<8x256xf32, #tpu.memory_space<vmem>>, vector<8x256xf32>,
    return
  }
  func.func @transform_0(%arg0: i32) -> i32 {
    %c0_i32 = arith.constant 0 : i32
    %c0_i32_0 = arith.constant 0 : i32
    return %c0_i32 : i32
  }
  func.func @transform_1(%arg0: i32) -> (i32, i32) {
    %c0_i32 = arith.constant 0 : i32
    %c0_i32_0 = arith.constant 0 : i32
    return %c0_i32, %arg0 : i32, i32
  }
  func.func @transform_2(%arg0: i32) -> (i32, i32) {
    %c0_i32 = arith.constant 0 : i32
    %c0_i32_0 = arith.constant 0 : i32
    %c0_i32_1 = arith.constant 0 : i32
    return %c0_i32, %c0_i32_0 : i32, i32
  }
  func.func @transform_3(%arg0: i32) -> (i32, i32) {
    %c0_i32 = arith.constant 0 : i32
    %c0_i32_0 = arith.constant 0 : i32
    %c0_i32_1 = arith.constant 0 : i32
    return %c0_i32, %c0_i32_0 : i32, i32
  }
  func.func @transform_4(%arg0: i32) -> (i32, i32) {
    %c0_i32 = arith.constant 0 : i32
    %c0_i32_0 = arith.constant 0 : i32
    %c0_i32_1 = arith.constant 0 : i32
    return %c0_i32, %c0_i32_0 : i32, i32
  }
  func.func @transform_5(%arg0: i32) -> (i32, i32) {
    %c0_i32 = arith.constant 0 : i32
    %c0_i32_0 = arith.constant 0 : i32
    %c0_i32_1 = arith.constant 0 : i32
    return %c0_i32, %c0_i32_0 : i32, i32
  }
  func.func @transform_6(%arg0: i32) -> (i32, i32) {
    %c0_i32 = arith.constant 0 : i32
    %c0_i32_0 = arith.constant 0 : i32
    %c0_i32_1 = arith.constant 0 : i32
    return %c0_i32, %c0_i32_0 : i32, i32
  }
  func.func @transform_7(%arg0: i32) -> (i32, i32) {
    %c0_i32 = arith.constant 0 : i32
    %c0_i32_0 = arith.constant 0 : i32
    %c0_i32_1 = arith.constant 0 : i32
    return %c0_i32, %c0_i32_0 : i32, i32
  }
  func.func @transform_8(%arg0: i32) -> (i32, i32) {
    %c0_i32 = arith.constant 0 : i32
    %c0_i32_0 = arith.constant 0 : i32
    %c0_i32_1 = arith.constant 0 : i32
    return %c0_i32, %c0_i32_0 : i32, i32
  }
  func.func @transform_9(%arg0: i32) -> (i32, i32) {
    %c0_i32 = arith.constant 0 : i32
    %c0_i32_0 = arith.constant 0 : i32
    %c0_i32_1 = arith.constant 0 : i32
    return %c0_i32, %c0_i32_0 : i32, i32
  }
  func.func @transform_10(%arg0: i32) -> (i32, i32) {
    %c0_i32 = arith.constant 0 : i32
    %c0_i32_0 = arith.constant 0 : i32
    return %c0_i32, %arg0 : i32, i32
  }
}

</mosaic_0001>

<llo_original>
// kernel: tpu_custom_call.1
$region0: #{tpu_custom_call.1}
  #allocation0 [shape = 'u32[]', space=smem, size = 0x4, offset = 0x4, fixed_abs, tag = 'smem constant byte address 0x4 - core index']
  #allocation1 [shape = 'u32[72,128]{1,0:T(1,128)}', space=vmem, size = 0x9000, scoped, tag = 'internal scratch']
  %s0 = inlined_call_operand.vmem [shape: f32[3], index: 0, kind: input, shape index: {}]
  %s1 = inlined_call_operand.vmem [shape: f32[16,512], index: 1, kind: input, shape index: {}]
  %s2 = inlined_call_operand.vmem [shape: f32[32,16], index: 2, kind: input, shape index: {}]
  %s3 = inlined_call_operand.vmem [shape: f32[32,1], index: 3, kind: input, shape index: {}]
  %s4 = inlined_call_operand.vmem [shape: f32[64,32], index: 4, kind: input, shape index: {}]
  %s5 = inlined_call_operand.vmem [shape: f32[64,1], index: 5, kind: input, shape index: {}]
  %s6 = inlined_call_operand.vmem [shape: f32[32,64], index: 6, kind: input, shape index: {}]
  %s7 = inlined_call_operand.vmem [shape: f32[32,1], index: 7, kind: input, shape index: {}]
  %s8 = inlined_call_operand.vmem [shape: f32[8,32], index: 8, kind: input, shape index: {}]
  %s9 = inlined_call_operand.vmem [shape: f32[8,1], index: 9, kind: input, shape index: {}]
  %s10 = inlined_call_operand.hbm [shape: f32[8,512], index: 10, kind: output, shape index: {}]
  %s11 = sld [smem:[#allocation0]]
  $region100: #{tpu_custom_call.1} parent=0
    _
  %s13 = ssub.s32 1, %s11
  %s14 = scalar_select 0, %s13, %s11
  $region1: #{tpu_custom_call.1} parent=0
    #allocation2 [shape = 'u8[512]{0}', space=smem, size = 0x200, scoped, tag = 'input window, operand 0, single buffered']
    #allocation3 [shape = 's32[2]{0}', space=sflag, size = 0x8, scoped, tag = 'scoped memory for tpu_custom_call.1']
    #allocation4 [shape = 's32[2]{0}', space=sflag, size = 0x8, scoped, tag = 'scoped memory for tpu_custom_call.1']
    #allocation5 [shape = 'u8[32768]{0}', space=vmem, size = 0x8000, scoped, tag = 'input window, operand 1']
    #allocation6 [shape = 'u8[16384]{0}', space=vmem, size = 0x4000, scoped, tag = 'output window, operand 0']
    %15 = vsyncpa [#allocation4], 0
    %16 = vsyncpa [#allocation3], 0
    %s17 = scalar_lea.sflag [#allocation3], 1
    %18 = vsyncpa %s17, 0
    loop: start=0, step=1, limit=4
    $region2: #{tpu_custom_call.1} parent=1 // loop_pre_header
      _
    $region3: #{tpu_custom_call.1} parent=1 // loop_header
      %s20 = sphi 0, %s24
      %p21 = scmp.ge.s32.totalorder %s20, 4
      %s28 = sphi 0, %s28
      %s30 = sphi 0, %s28
      %s31 = sphi 0, %s30
      %s45 = sphi 0, %s31
      %s51 = sphi 0, %s53
      %s54 = sphi 0, %s51
      %s55 = sphi 0, %s54
      %s71 = sphi 0, %s55
      %s75 = sphi 0, %s75
      %s77 = sphi 0, %s75
      %s78 = sphi 0, %s77
      %s92 = sphi 0, %s78
      %s96 = sphi 0, %s96
      %s98 = sphi 0, %s96
      %s99 = sphi 0, %s98
      %s113 = sphi 0, %s99
      %s117 = sphi 0, %s117
      %s119 = sphi 0, %s117
      %s120 = sphi 0, %s119
      %s134 = sphi 0, %s120
      %s138 = sphi 0, %s138
      %s140 = sphi 0, %s138
      %s141 = sphi 0, %s140
      %s155 = sphi 0, %s141
      %s159 = sphi 0, %s159
      %s161 = sphi 0, %s159
      %s162 = sphi 0, %s161
      %s176 = sphi 0, %s162
      %s180 = sphi 0, %s180
      %s182 = sphi 0, %s180
      %s183 = sphi 0, %s182
      %s197 = sphi 0, %s183
      %s201 = sphi 0, %s201
      %s203 = sphi 0, %s201
      %s204 = sphi 0, %s203
      %s218 = sphi 0, %s204
      %s222 = sphi 0, %s222
      %s224 = sphi 0, %s222
      %s225 = sphi 0, %s224
      %s239 = sphi 0, %s225
      %s245 = sphi 0, %s247
      %s248 = sphi 0, %s245
      %s249 = sphi 0, %s248
      %s265 = sphi 0, %s249
    $region4: #{tpu_custom_call.1} parent=1 // loop_header_branch
      %23 = sbr.rel (%p21) target = $region8
    $region5: #{tpu_custom_call.1} parent=1 // loop_body
      %s25 = ssub.s32 %s20, 1
      %s26 = ssub.s32 %s20, 2
      %s27 = sadd.s32 %s20, 1
      %s29 = sadd.s32 %s28, 1
      %p32 = scmp.eq.s32.totalorder %s20, 1
      %p33 = scmp.ne.s32.totalorder %s28, %s30
      %p34 = scmp.eq.s32.totalorder %s20, 0
      %p35 = por %p33, %p34
      %p36 = scmp.ne.s32.totalorder %s28, %s30
      %p37 = scmp.eq.s32.totalorder %s25, 1
      %p38 = por %p36, %p37
      %p39 = scmp.ne.s32.totalorder %s30, %s31
      %p40 = scmp.eq.s32.totalorder %s25, 0
      %p41 = por %p39, %p40
      %p42 = scmp.ne.s32.totalorder %s30, %s31
      %p43 = scmp.eq.s32.totalorder %s26, 1
      %p44 = por %p42, %p43
      %p46 = scmp.ne.s32.totalorder %s31, %s45
      %p47 = scmp.eq.s32.totalorder %s26, 0
      %p48 = por %p46, %p47
      %s49 = ssub.s32 %s20, %s27
      %p50 = scmp.eq.s32.totalorder %s49, 0
      %s52 = sadd.s32 %s51, 1
      %s53 = scalar_select %p50, %s51, %s52
      %p56 = pneg %p50
      %p57 = scmp.eq.s32.totalorder %s20, 1
      %p58 = por %p56, %p57
      %p59 = scmp.ne.s32.totalorder %s51, %s54
      %p60 = scmp.eq.s32.totalorder %s20, 0
      %p61 = por %p59, %p60
      %p62 = scmp.ne.s32.totalorder %s51, %s54
      %p63 = scmp.eq.s32.totalorder %s25, 1
      %p64 = por %p62, %p63
      %p65 = scmp.ne.s32.totalorder %s54, %s55
      %p66 = scmp.eq.s32.totalorder %s25, 0
      %p67 = por %p65, %p66
      %p68 = scmp.ne.s32.totalorder %s54, %s55
      %p69 = scmp.eq.s32.totalorder %s26, 1
      %p70 = por %p68, %p69
      %p72 = scmp.ne.s32.totalorder %s55, %s71
      %p73 = scmp.eq.s32.totalorder %s26, 0
      %p74 = por %p72, %p73
      %s76 = sadd.s32 %s75, 1
      %p79 = scmp.eq.s32.totalorder %s20, 1
      %p80 = scmp.ne.s32.totalorder %s75, %s77
      %p81 = scmp.eq.s32.totalorder %s20, 0
      %p82 = por %p80, %p81
      %p83 = scmp.ne.s32.totalorder %s75, %s77
      %p84 = scmp.eq.s32.totalorder %s25, 1
      %p85 = por %p83, %p84
      %p86 = scmp.ne.s32.totalorder %s77, %s78
      %p87 = scmp.eq.s32.totalorder %s25, 0
      %p88 = por %p86, %p87
      %p89 = scmp.ne.s32.totalorder %s77, %s78
      %p90 = scmp.eq.s32.totalorder %s26, 1
      %p91 = por %p89, %p90
      %p93 = scmp.ne.s32.totalorder %s78, %s92
      %p94 = scmp.eq.s32.totalorder %s26, 0
      %p95 = por %p93, %p94
      %s97 = sadd.s32 %s96, 1
      %p100 = scmp.eq.s32.totalorder %s20, 1
      %p101 = scmp.ne.s32.totalorder %s96, %s98
      %p102 = scmp.eq.s32.totalorder %s20, 0
      %p103 = por %p101, %p102
      %p104 = scmp.ne.s32.totalorder %s96, %s98
      %p105 = scmp.eq.s32.totalorder %s25, 1
      %p106 = por %p104, %p105
      %p107 = scmp.ne.s32.totalorder %s98, %s99
      %p108 = scmp.eq.s32.totalorder %s25, 0
      %p109 = por %p107, %p108
      %p110 = scmp.ne.s32.totalorder %s98, %s99
      %p111 = scmp.eq.s32.totalorder %s26, 1
      %p112 = por %p110, %p111
      %p114 = scmp.ne.s32.totalorder %s99, %s113
      %p115 = scmp.eq.s32.totalorder %s26, 0
      %p116 = por %p114, %p115
      %s118 = sadd.s32 %s117, 1
      %p121 = scmp.eq.s32.totalorder %s20, 1
      %p122 = scmp.ne.s32.totalorder %s117, %s119
      %p123 = scmp.eq.s32.totalorder %s20, 0
      %p124 = por %p122, %p123
      %p125 = scmp.ne.s32.totalorder %s117, %s119
      %p126 = scmp.eq.s32.totalorder %s25, 1
      %p127 = por %p125, %p126
      %p128 = scmp.ne.s32.totalorder %s119, %s120
      %p129 = scmp.eq.s32.totalorder %s25, 0
      %p130 = por %p128, %p129
      %p131 = scmp.ne.s32.totalorder %s119, %s120
      %p132 = scmp.eq.s32.totalorder %s26, 1
      %p133 = por %p131, %p132
      %p135 = scmp.ne.s32.totalorder %s120, %s134
      %p136 = scmp.eq.s32.totalorder %s26, 0
      %p137 = por %p135, %p136
      %s139 = sadd.s32 %s138, 1
      %p142 = scmp.eq.s32.totalorder %s20, 1
      %p143 = scmp.ne.s32.totalorder %s138, %s140
      %p144 = scmp.eq.s32.totalorder %s20, 0
      %p145 = por %p143, %p144
      %p146 = scmp.ne.s32.totalorder %s138, %s140
      %p147 = scmp.eq.s32.totalorder %s25, 1
      %p148 = por %p146, %p147
      %p149 = scmp.ne.s32.totalorder %s140, %s141
      %p150 = scmp.eq.s32.totalorder %s25, 0
      %p151 = por %p149, %p150
      %p152 = scmp.ne.s32.totalorder %s140, %s141
      %p153 = scmp.eq.s32.totalorder %s26, 1
      %p154 = por %p152, %p153
      %p156 = scmp.ne.s32.totalorder %s141, %s155
      %p157 = scmp.eq.s32.totalorder %s26, 0
      %p158 = por %p156, %p157
      %s160 = sadd.s32 %s159, 1
      %p163 = scmp.eq.s32.totalorder %s20, 1
      %p164 = scmp.ne.s32.totalorder %s159, %s161
      %p165 = scmp.eq.s32.totalorder %s20, 0
      %p166 = por %p164, %p165
      %p167 = scmp.ne.s32.totalorder %s159, %s161
      %p168 = scmp.eq.s32.totalorder %s25, 1
      %p169 = por %p167, %p168
      %p170 = scmp.ne.s32.totalorder %s161, %s162
      %p171 = scmp.eq.s32.totalorder %s25, 0
      %p172 = por %p170, %p171
      %p173 = scmp.ne.s32.totalorder %s161, %s162
      %p174 = scmp.eq.s32.totalorder %s26, 1
      %p175 = por %p173, %p174
      %p177 = scmp.ne.s32.totalorder %s162, %s176
      %p178 = scmp.eq.s32.totalorder %s26, 0
      %p179 = por %p177, %p178
      %s181 = sadd.s32 %s180, 1
      %p184 = scmp.eq.s32.totalorder %s20, 1
      %p185 = scmp.ne.s32.totalorder %s180, %s182
      %p186 = scmp.eq.s32.totalorder %s20, 0
      %p187 = por %p185, %p186
      %p188 = scmp.ne.s32.totalorder %s180, %s182
      %p189 = scmp.eq.s32.totalorder %s25, 1
      %p190 = por %p188, %p189
      %p191 = scmp.ne.s32.totalorder %s182, %s183
      %p192 = scmp.eq.s32.totalorder %s25, 0
      %p193 = por %p191, %p192
      %p194 = scmp.ne.s32.totalorder %s182, %s183
      %p195 = scmp.eq.s32.totalorder %s26, 1
      %p196 = por %p194, %p195
      %p198 = scmp.ne.s32.totalorder %s183, %s197
      %p199 = scmp.eq.s32.totalorder %s26, 0
      %p200 = por %p198, %p199
      %s202 = sadd.s32 %s201, 1
      %p205 = scmp.eq.s32.totalorder %s20, 1
      %p206 = scmp.ne.s32.totalorder %s201, %s203
      %p207 = scmp.eq.s32.totalorder %s20, 0
      %p208 = por %p206, %p207
      %p209 = scmp.ne.s32.totalorder %s201, %s203
      %p210 = scmp.eq.s32.totalorder %s25, 1
      %p211 = por %p209, %p210
      %p212 = scmp.ne.s32.totalorder %s203, %s204
      %p213 = scmp.eq.s32.totalorder %s25, 0
      %p214 = por %p212, %p213
      %p215 = scmp.ne.s32.totalorder %s203, %s204
      %p216 = scmp.eq.s32.totalorder %s26, 1
      %p217 = por %p215, %p216
      %p219 = scmp.ne.s32.totalorder %s204, %s218
      %p220 = scmp.eq.s32.totalorder %s26, 0
      %p221 = por %p219, %p220
      %s223 = sadd.s32 %s222, 1
      %p226 = scmp.eq.s32.totalorder %s20, 1
      %p227 = scmp.ne.s32.totalorder %s222, %s224
      %p228 = scmp.eq.s32.totalorder %s20, 0
      %p229 = por %p227, %p228
      %p230 = scmp.ne.s32.totalorder %s222, %s224
      %p231 = scmp.eq.s32.totalorder %s25, 1
      %p232 = por %p230, %p231
      %p233 = scmp.ne.s32.totalorder %s224, %s225
      %p234 = scmp.eq.s32.totalorder %s25, 0
      %p235 = por %p233, %p234
      %p236 = scmp.ne.s32.totalorder %s224, %s225
      %p237 = scmp.eq.s32.totalorder %s26, 1
      %p238 = por %p236, %p237
      %p240 = scmp.ne.s32.totalorder %s225, %s239
      %p241 = scmp.eq.s32.totalorder %s26, 0
      %p242 = por %p240, %p241
      %s243 = ssub.s32 %s20, %s27
      %p244 = scmp.eq.s32.totalorder %s243, 0
      %s246 = sadd.s32 %s245, 1
      %s247 = scalar_select %p244, %s245, %s246
      %p250 = pneg %p244
      %p251 = scmp.eq.s32.totalorder %s20, 1
      %p252 = por %p250, %p251
      %p253 = scmp.ne.s32.totalorder %s245, %s248
      %p254 = scmp.eq.s32.totalorder %s20, 0
      %p255 = por %p253, %p254
      %p256 = scmp.ne.s32.totalorder %s245, %s248
      %p257 = scmp.eq.s32.totalorder %s25, 1
      %p258 = por %p256, %p257
      %p259 = scmp.ne.s32.totalorder %s248, %s249
      %p260 = scmp.eq.s32.totalorder %s25, 0
      %p261 = por %p259, %p260
      %p262 = scmp.ne.s32.totalorder %s248, %s249
      %p263 = scmp.eq.s32.totalorder %s26, 1
      %p264 = por %p262, %p263
      %p266 = scmp.ne.s32.totalorder %s249, %s265
      %p267 = scmp.eq.s32.totalorder %s26, 0
      %p268 = por %p266, %p267
      %p269 = scmp.le.s32.totalorder 1, %s20
      %p270 = scmp.lt.s32.totalorder %s20, 3
      %p271 = pnand %p269, %p270
      %p272 = pneg %p271
      // Predicated region
      $region9: #{tpu_custom_call.1} parent=5 // pred_check
        _
      $region10: #{tpu_custom_call.1} parent=5 // pred_check_branch
        %274 = sbr.rel (%p271) target = $region12
      $region11: #{tpu_custom_call.1} parent=5 // pred_region
        %s275 = ssub.s32 %s20, 1
        // Predicated region
        $region13: #{tpu_custom_call.1} parent=11 // pred_check
          %p276 = pneg %p41
        $region14: #{tpu_custom_call.1} parent=11 // pred_check_branch
          %278 = sbr.rel (%p276) target = $region16
        $region15: #{tpu_custom_call.1} parent=11 // pred_region
          %280 = vsyncadd [#allocation4], 0
          %s282 = sshll.u32 %s0, 4
          %s283 = int_to_ptr.vmem [resolvable:$true] %s282
          %285 = dma.vmem_to_smem %s283, 16, [#allocation2], [#allocation4]
        $region16: #{tpu_custom_call.1} parent=11 // pred_fallthru
          _
        // Predicated region
        $region17: #{tpu_custom_call.1} parent=11 // pred_check
          %p286 = pneg %p88
        $region18: #{tpu_custom_call.1} parent=11 // pred_check_branch
          %288 = sbr.rel (%p286) target = $region20
        $region19: #{tpu_custom_call.1} parent=11 // pred_region
          _
        $region20: #{tpu_custom_call.1} parent=11 // pred_fallthru
          _
        // Predicated region
        $region21: #{tpu_custom_call.1} parent=11 // pred_check
          %p289 = pneg %p109
        $region22: #{tpu_custom_call.1} parent=11 // pred_check_branch
          %291 = sbr.rel (%p289) target = $region24
        $region23: #{tpu_custom_call.1} parent=11 // pred_region
          _
        $region24: #{tpu_custom_call.1} parent=11 // pred_fallthru
          _
        // Predicated region
        $region25: #{tpu_custom_call.1} parent=11 // pred_check
          %p292 = pneg %p130
        $region26: #{tpu_custom_call.1} parent=11 // pred_check_branch
          %294 = sbr.rel (%p292) target = $region28
        $region27: #{tpu_custom_call.1} parent=11 // pred_region
          _
        $region28: #{tpu_custom_call.1} parent=11 // pred_fallthru
          _
        // Predicated region
        $region29: #{tpu_custom_call.1} parent=11 // pred_check
          %p295 = pneg %p151
        $region30: #{tpu_custom_call.1} parent=11 // pred_check_branch
          %297 = sbr.rel (%p295) target = $region32
        $region31: #{tpu_custom_call.1} parent=11 // pred_region
          _
        $region32: #{tpu_custom_call.1} parent=11 // pred_fallthru
          _
        // Predicated region
        $region33: #{tpu_custom_call.1} parent=11 // pred_check
          %p298 = pneg %p172
        $region34: #{tpu_custom_call.1} parent=11 // pred_check_branch
          %300 = sbr.rel (%p298) target = $region36
        $region35: #{tpu_custom_call.1} parent=11 // pred_region
          _
        $region36: #{tpu_custom_call.1} parent=11 // pred_fallthru
          _
        // Predicated region
        $region37: #{tpu_custom_call.1} parent=11 // pred_check
          %p301 = pneg %p193
        $region38: #{tpu_custom_call.1} parent=11 // pred_check_branch
          %303 = sbr.rel (%p301) target = $region40
        $region39: #{tpu_custom_call.1} parent=11 // pred_region
          _
        $region40: #{tpu_custom_call.1} parent=11 // pred_fallthru
          _
        // Predicated region
        $region41: #{tpu_custom_call.1} parent=11 // pred_check
          %p304 = pneg %p214
        $region42: #{tpu_custom_call.1} parent=11 // pred_check_branch
          %306 = sbr.rel (%p304) target = $region44
        $region43: #{tpu_custom_call.1} parent=11 // pred_region
          _
        $region44: #{tpu_custom_call.1} parent=11 // pred_fallthru
          _
        // Predicated region
        $region45: #{tpu_custom_call.1} parent=11 // pred_check
          %p307 = pneg %p235
        $region46: #{tpu_custom_call.1} parent=11 // pred_check_branch
          %309 = sbr.rel (%p307) target = $region48
        $region47: #{tpu_custom_call.1} parent=11 // pred_region
          _
        $region48: #{tpu_custom_call.1} parent=11 // pred_fallthru
          _
      $region12: #{tpu_custom_call.1} parent=5 // pred_fallthru
        _
      %p310 = scmp.lt.s32.totalorder %s20, 2
      // Predicated region
      $region49: #{tpu_custom_call.1} parent=5 // pred_check
        %p311 = pneg %p310
      $region50: #{tpu_custom_call.1} parent=5 // pred_check_branch
        %313 = sbr.rel (%p311) target = $region52
      $region51: #{tpu_custom_call.1} parent=5 // pred_region
        // Predicated region
        $region53: #{tpu_custom_call.1} parent=51 // pred_check
          %p314 = pneg %p61
        $region54: #{tpu_custom_call.1} parent=51 // pred_check_branch
          %316 = sbr.rel (%p314) target = $region56
        $region55: #{tpu_custom_call.1} parent=51 // pred_region
          %s317 = sand.u32 %s51, 1
          %s318 = sand.u32 %s51, 1
          %s319 = smul.addr %s318, 32
          %s320 = scalar_lea.vmem [#allocation5], %s319
          %s321 = smul.u32 2, %s20
          %s322 = smul.addr %s321, 8
          %s323 = scalar_lea.vmem %s1, %s322
          // Predicated region
          $region57: #{tpu_custom_call.1} parent=55 // pred_check
            _
          $region58: #{tpu_custom_call.1} parent=55 // pred_check_branch
            %325 = sbr.rel (0) target = $region60
          $region59: #{tpu_custom_call.1} parent=55 // pred_region
            // Predicated region
            $region61: #{tpu_custom_call.1} parent=59 // pred_check
              _
            $region62: #{tpu_custom_call.1} parent=59 // pred_check_branch
              %327 = sbr.rel (0) target = $region64
            $region63: #{tpu_custom_call.1} parent=59 // pred_region
              loop: start=0, step=1, limit=1
              $region65: #{tpu_custom_call.1} parent=63 // loop_pre_header
                _
              $region66: #{tpu_custom_call.1} parent=63 // loop_header
                %s329 = sphi 0, %s333
                %p330 = scmp.ge.s32.totalorder %s329, 1
                %s334 = sphi %s323, %s323
                %s335 = sphi %s320, %s320
              $region67: #{tpu_custom_call.1} parent=63 // loop_header_branch
                %332 = sbr.rel (%p330) target = $region71
              $region68: #{tpu_custom_call.1} parent=63 // loop_body
                %v336 = vld [vmem:[%s334] sm:$0xff]
                %337 = vst [vmem:[%s335] sm:$0xff] %v336
                %v338 = vld [vmem:[%s334 + $0x8] sm:$0xff]
                %339 = vst [vmem:[%s335 + $0x8] sm:$0xff] %v338
                %v340 = vld [vmem:[%s334 + $0x20] sm:$0xff]
                %341 = vst [vmem:[%s335 + $0x10] sm:$0xff] %v340
                %v342 = vld [vmem:[%s334 + $0x28] sm:$0xff]
                %343 = vst [vmem:[%s335 + $0x18] sm:$0xff] %v342
              $region69: #{tpu_custom_call.1} parent=63 // loop_footer
                %s333 = sadd.s32 1, %s329
              $region70: #{tpu_custom_call.1} parent=63 // loop_footer_branch
                %328 = sbr.rel target = $region66
              $region71: #{tpu_custom_call.1} parent=63 // loop_exit
                _
            $region64: #{tpu_custom_call.1} parent=59 // pred_fallthru
              _
            // Predicated region
            $region72: #{tpu_custom_call.1} parent=59 // pred_check
              _
            $region73: #{tpu_custom_call.1} parent=59 // pred_check_branch
              %345 = sbr.rel target = $region75
            $region74: #{tpu_custom_call.1} parent=59 // pred_region
              _
            $region75: #{tpu_custom_call.1} parent=59 // pred_fallthru
              _
          $region60: #{tpu_custom_call.1} parent=55 // pred_fallthru
            _
          %346 = vnop
        $region56: #{tpu_custom_call.1} parent=51 // pred_fallthru
          _
      $region52: #{tpu_custom_call.1} parent=5 // pred_fallthru
        _
      %p347 = scmp.le.s32.totalorder 1, %s20
      %p348 = scmp.lt.s32.totalorder %s20, 3
      %p349 = pnand %p347, %p348
      %p350 = pneg %p349
      // Predicated region
      $region76: #{tpu_custom_call.1} parent=5 // pred_check
        _
      $region77: #{tpu_custom_call.1} parent=5 // pred_check_branch
        %352 = sbr.rel (%p349) target = $region79
      $region78: #{tpu_custom_call.1} parent=5 // pred_region
        %s353 = ssub.s32 %s20, 1
        // Predicated region
        $region80: #{tpu_custom_call.1} parent=78 // pred_check
          %p354 = pneg %p41
        $region81: #{tpu_custom_call.1} parent=78 // pred_check_branch
          %356 = sbr.rel (%p354) target = $region83
        $region82: #{tpu_custom_call.1} parent=78 // pred_region
          %358 = dma.done [#allocation4], 16
        $region83: #{tpu_custom_call.1} parent=78 // pred_fallthru
          _
        %s359 = sand.u32 %s54, 1
        %s360 = sand.u32 %s54, 1
        %s361 = smul.addr %s360, 32
        %s362 = scalar_lea.vmem [#allocation5], %s361
        // Predicated region
        $region84: #{tpu_custom_call.1} parent=78 // pred_check
          %p363 = pneg %p67
        $region85: #{tpu_custom_call.1} parent=78 // pred_check_branch
          %365 = sbr.rel (%p363) target = $region87
        $region86: #{tpu_custom_call.1} parent=78 // pred_region
          _
        $region87: #{tpu_custom_call.1} parent=78 // pred_fallthru
          _
        %366 = sfence
        %p367 = pneg %p41
        %p368 = pneg %p38
        %s369 = sand.u32 %s54, 1
        %s370 = sand.u32 %s54, 1
        %s371 = smul.addr %s370, 32
        %s372 = scalar_lea.vmem [#allocation5], %s371
        %p373 = pneg %p67
        %p374 = pneg %p64
        %p375 = pneg %p88
        %p376 = pneg %p85
        %p377 = pneg %p109
        %p378 = pneg %p106
        %p379 = pneg %p130
        %p380 = pneg %p127
        %p381 = pneg %p151
        %p382 = pneg %p148
        %p383 = pneg %p172
        %p384 = pneg %p169
        %p385 = pneg %p193
        %p386 = pneg %p190
        %p387 = pneg %p214
        %p388 = pneg %p211
        %p389 = pneg %p235
        %p390 = pneg %p232
        %p391 = pneg %p261
        %p392 = pneg %p258
        %s393 = sand.u32 %s248, 1
        %s394 = scalar_lea.sflag [#allocation3], %s393
        %s395 = sand.u32 %s248, 1
        %s396 = smul.addr %s395, 16
        %s397 = scalar_lea.vmem [#allocation6], %s396
        %s398 = smul.u32 2, %s25
        %s399 = smul.u32 2, %s25
        %s400 = sld [smem:[#allocation2]]
        %s401 = sld [smem:[#allocation2 + $0x1]]
        %s402 = sld [smem:[#allocation2 + $0x2]]
        %v403 = vld [vmem:[%s362] sm:$0xff]
        %v404 = vld [vmem:[%s362 + $0x8] sm:$0xff]
        %v405 = vld [vmem:[%s362 + $0x10] sm:$0xff]
        %v406 = vld [vmem:[%s362 + $0x18] sm:$0xff]
        %v407 = vld [vmem:[%s2] sm:$0xff]
        %v408 = vld [vmem:[%s2 + $0x8] sm:$0xff]
        %v409 = vld [vmem:[%s2 + $0x10] sm:$0xff]
        %v410 = vld [vmem:[%s2 + $0x18] sm:$0xff]
        %v411 = vld [vmem:[%s3] sm:$0xff]
        %v412 = vld [vmem:[%s3 + $0x8] sm:$0xff]
        %v413 = vld [vmem:[%s3 + $0x10] sm:$0xff]
        %v414 = vld [vmem:[%s3 + $0x18] sm:$0xff]
        %416 = vset.pattern.permute.xlu0 0
        %417 = vperm.xlu0 %416, %v411
        %v418 = vpop.permute.xlu0 %417
        %421 = vset.pattern.permute.xlu0 0
        %422 = vperm.xlu0 %421, %v412
        %v423 = vpop.permute.xlu0 %422
        %426 = vset.pattern.permute.xlu0 0
        %427 = vperm.xlu0 %426, %v413
        %v428 = vpop.permute.xlu0 %427
        %431 = vset.pattern.permute.xlu0 0
        %432 = vperm.xlu0 %431, %v414
        %v433 = vpop.permute.xlu0 %432
        %vm435 = vcmask 130048
        %v437 = vsel %vm435, %v407, 0
        %v440 = vsel %vm435, %v408, 0
        %v443 = vsel %vm435, %v409, 0
        %v446 = vsel %vm435, %v410, 0
        %448 = vmatpush.msra.mxu0 0.0
        %449 = vmatpush.msra.mxu0 0.0
        %450 = vmatpush.msra.mxu0 0.0
        %451 = vmatpush.msra.mxu0 0.0
        %452 = vmatpush.msra.mxu0 0.0
        %453 = vmatpush.msra.mxu0 0.0
        %454 = vmatpush.msra.mxu0 0.0
        %455 = vmatpush.msra.mxu0 0.0
        %456 = vmatpush.msra.mxu0 0.0
        %457 = vmatpush.msra.mxu0 0.0
        %458 = vmatpush.msra.mxu0 0.0
        %459 = vmatpush.msra.mxu0 0.0
        %460 = vmatpush.msra.mxu0 0.0
        %461 = vmatpush.msra.mxu0 0.0
        %462 = vmatpush.msra.mxu0 %v405
        %463 = vmatpush.msra.mxu0 %v403
        %464 = vmatmul.f32.gmra.mxu0 %v437
        %v465 = vpop.f32.mrf.mxu0
        %v466 = vadd.f32 %v418, %v465
        %467 = vmatmul.f32.gmra.mxu0 %v440
        %v468 = vpop.f32.mrf.mxu0
        %v469 = vadd.f32 %v423, %v468
        %470 = vmatmul.f32.gmra.mxu0 %v443
        %v471 = vpop.f32.mrf.mxu0
        %v472 = vadd.f32 %v428, %v471
        %473 = vmatmul.f32.gmra.mxu0 %v446
        %v474 = vpop.f32.mrf.mxu0
        %v475 = vadd.f32 %v433, %v474
        %476 = vdwg.mxu0
        %477 = vmatpush.msra.mxu0 0.0
        %478 = vmatpush.msra.mxu0 0.0
        %479 = vmatpush.msra.mxu0 0.0
        %480 = vmatpush.msra.mxu0 0.0
        %481 = vmatpush.msra.mxu0 0.0
        %482 = vmatpush.msra.mxu0 0.0
        %483 = vmatpush.msra.mxu0 0.0
        %484 = vmatpush.msra.mxu0 0.0
        %485 = vmatpush.msra.mxu0 0.0
        %486 = vmatpush.msra.mxu0 0.0
        %487 = vmatpush.msra.mxu0 0.0
        %488 = vmatpush.msra.mxu0 0.0
        %489 = vmatpush.msra.mxu0 0.0
        %490 = vmatpush.msra.mxu0 0.0
        %491 = vmatpush.msra.mxu0 %v406
        %492 = vmatpush.msra.mxu0 %v404
        %493 = vmatmul.f32.gmra.mxu0 %v437
        %v494 = vpop.f32.mrf.mxu0
        %v495 = vadd.f32 %v418, %v494
        %496 = vmatmul.f32.gmra.mxu0 %v440
        %v497 = vpop.f32.mrf.mxu0
        %v498 = vadd.f32 %v423, %v497
        %499 = vmatmul.f32.gmra.mxu0 %v443
        %v500 = vpop.f32.mrf.mxu0
        %v501 = vadd.f32 %v428, %v500
        %502 = vmatmul.f32.gmra.mxu0 %v446
        %v503 = vpop.f32.mrf.mxu0
        %v504 = vadd.f32 %v433, %v503
        %505 = vdwg.mxu0
        %vm506 = vcmp.ge.f32.partialorder %v466, 0.0
        %vm507 = vcmp.ge.f32.partialorder %v495, 0.0
        %vm508 = vcmp.ge.f32.partialorder %v469, 0.0
        %vm509 = vcmp.ge.f32.partialorder %v498, 0.0
        %vm510 = vcmp.ge.f32.partialorder %v472, 0.0
        %vm511 = vcmp.ge.f32.partialorder %v501, 0.0
        %vm512 = vcmp.ge.f32.partialorder %v475, 0.0
        %vm513 = vcmp.ge.f32.partialorder %v504, 0.0
        %v514 = vstv %s400
        %v515 = vmul.f32 %v514, %v466
        %v516 = vmul.f32 %v514, %v495
        %v517 = vmul.f32 %v514, %v469
        %v518 = vmul.f32 %v514, %v498
        %v519 = vmul.f32 %v514, %v472
        %v520 = vmul.f32 %v514, %v501
        %v521 = vmul.f32 %v514, %v475
        %v522 = vmul.f32 %v514, %v504
        %v523 = vsel %vm506, %v466, %v515
        %v524 = vsel %vm507, %v495, %v516
        %v525 = vsel %vm508, %v469, %v517
        %v526 = vsel %vm509, %v498, %v518
        %v527 = vsel %vm510, %v472, %v519
        %v528 = vsel %vm511, %v501, %v520
        %v529 = vsel %vm512, %v475, %v521
        %v530 = vsel %vm513, %v504, %v522
        %v531 = vld [vmem:[%s4] sm:$0xff]
        %v532 = vld [vmem:[%s4 + $0x8] sm:$0xff]
        %v533 = vld [vmem:[%s4 + $0x10] sm:$0xff]
        %v534 = vld [vmem:[%s4 + $0x18] sm:$0xff]
        %v535 = vld [vmem:[%s4 + $0x20] sm:$0xff]
        %v536 = vld [vmem:[%s4 + $0x28] sm:$0xff]
        %v537 = vld [vmem:[%s4 + $0x30] sm:$0xff]
        %v538 = vld [vmem:[%s4 + $0x38] sm:$0xff]
        %v539 = vld [vmem:[%s5] sm:$0xff]
        %v540 = vld [vmem:[%s5 + $0x8] sm:$0xff]
        %v541 = vld [vmem:[%s5 + $0x10] sm:$0xff]
        %v542 = vld [vmem:[%s5 + $0x18] sm:$0xff]
        %v543 = vld [vmem:[%s5 + $0x20] sm:$0xff]
        %v544 = vld [vmem:[%s5 + $0x28] sm:$0xff]
        %v545 = vld [vmem:[%s5 + $0x30] sm:$0xff]
        %v546 = vld [vmem:[%s5 + $0x38] sm:$0xff]
        %548 = vset.pattern.permute.xlu0 0
        %549 = vperm.xlu0 %548, %v539
        %v550 = vpop.permute.xlu0 %549
        %553 = vset.pattern.permute.xlu0 0
        %554 = vperm.xlu0 %553, %v540
        %v555 = vpop.permute.xlu0 %554
        %558 = vset.pattern.permute.xlu0 0
        %559 = vperm.xlu0 %558, %v541
        %v560 = vpop.permute.xlu0 %559
        %563 = vset.pattern.permute.xlu0 0
        %564 = vperm.xlu0 %563, %v542
        %v565 = vpop.permute.xlu0 %564
        %568 = vset.pattern.permute.xlu0 0
        %569 = vperm.xlu0 %568, %v543
        %v570 = vpop.permute.xlu0 %569
        %573 = vset.pattern.permute.xlu0 0
        %574 = vperm.xlu0 %573, %v544
        %v575 = vpop.permute.xlu0 %574
        %578 = vset.pattern.permute.xlu0 0
        %579 = vperm.xlu0 %578, %v545
        %v580 = vpop.permute.xlu0 %579
        %583 = vset.pattern.permute.xlu0 0
        %584 = vperm.xlu0 %583, %v546
        %v585 = vpop.permute.xlu0 %584
        %vm587 = vcmask 261120
        %v589 = vsel %vm587, %v531, 0
        %v592 = vsel %vm587, %v532, 0
        %v595 = vsel %vm587, %v533, 0
        %v598 = vsel %vm587, %v534, 0
        %v601 = vsel %vm587, %v535, 0
        %v604 = vsel %vm587, %v536, 0
        %v607 = vsel %vm587, %v537, 0
        %v610 = vsel %vm587, %v538, 0
        %612 = vmatpush.msra.mxu0 0.0
        %613 = vmatpush.msra.mxu0 0.0
        %614 = vmatpush.msra.mxu0 0.0
        %615 = vmatpush.msra.mxu0 0.0
        %616 = vmatpush.msra.mxu0 0.0
        %617 = vmatpush.msra.mxu0 0.0
        %618 = vmatpush.msra.mxu0 0.0
        %619 = vmatpush.msra.mxu0 0.0
        %620 = vmatpush.msra.mxu0 0.0
        %621 = vmatpush.msra.mxu0 0.0
        %622 = vmatpush.msra.mxu0 0.0
        %623 = vmatpush.msra.mxu0 0.0
        %624 = vmatpush.msra.mxu0 %v529
        %625 = vmatpush.msra.mxu0 %v527
        %626 = vmatpush.msra.mxu0 %v525
        %627 = vmatpush.msra.mxu0 %v523
        %628 = vmatmul.f32.gmra.mxu0 %v589
        %v629 = vpop.f32.mrf.mxu0
        %v630 = vadd.f32 %v550, %v629
        %631 = vmatmul.f32.gmra.mxu0 %v592
        %v632 = vpop.f32.mrf.mxu0
        %v633 = vadd.f32 %v555, %v632
        %634 = vmatmul.f32.gmra.mxu0 %v595
        %v635 = vpop.f32.mrf.mxu0
        %v636 = vadd.f32 %v560, %v635
        %637 = vmatmul.f32.gmra.mxu0 %v598
        %v638 = vpop.f32.mrf.mxu0
        %v639 = vadd.f32 %v565, %v638
        %640 = vmatmul.f32.gmra.mxu0 %v601
        %v641 = vpop.f32.mrf.mxu0
        %v642 = vadd.f32 %v570, %v641
        %643 = vmatmul.f32.gmra.mxu0 %v604
        %v644 = vpop.f32.mrf.mxu0
        %v645 = vadd.f32 %v575, %v644
        %646 = vmatmul.f32.gmra.mxu0 %v607
        %v647 = vpop.f32.mrf.mxu0
        %v648 = vadd.f32 %v580, %v647
        %649 = vmatmul.f32.gmra.mxu0 %v610
        %v650 = vpop.f32.mrf.mxu0
        %v651 = vadd.f32 %v585, %v650
        %652 = vdwg.mxu0
        %653 = vmatpush.msra.mxu0 0.0
        %654 = vmatpush.msra.mxu0 0.0
        %655 = vmatpush.msra.mxu0 0.0
        %656 = vmatpush.msra.mxu0 0.0
        %657 = vmatpush.msra.mxu0 0.0
        %658 = vmatpush.msra.mxu0 0.0
        %659 = vmatpush.msra.mxu0 0.0
        %660 = vmatpush.msra.mxu0 0.0
        %661 = vmatpush.msra.mxu0 0.0
        %662 = vmatpush.msra.mxu0 0.0
        %663 = vmatpush.msra.mxu0 0.0
        %664 = vmatpush.msra.mxu0 0.0
        %665 = vmatpush.msra.mxu0 %v530
        %666 = vmatpush.msra.mxu0 %v528
        %667 = vmatpush.msra.mxu0 %v526
        %668 = vmatpush.msra.mxu0 %v524
        %669 = vmatmul.f32.gmra.mxu0 %v589
        %v670 = vpop.f32.mrf.mxu0
        %v671 = vadd.f32 %v550, %v670
        %672 = vmatmul.f32.gmra.mxu0 %v592
        %v673 = vpop.f32.mrf.mxu0
        %v674 = vadd.f32 %v555, %v673
        %675 = vmatmul.f32.gmra.mxu0 %v595
        %v676 = vpop.f32.mrf.mxu0
        %v677 = vadd.f32 %v560, %v676
        %678 = vmatmul.f32.gmra.mxu0 %v598
        %v679 = vpop.f32.mrf.mxu0
        %v680 = vadd.f32 %v565, %v679
        %681 = vmatmul.f32.gmra.mxu0 %v601
        %v682 = vpop.f32.mrf.mxu0
        %v683 = vadd.f32 %v570, %v682
        %684 = vmatmul.f32.gmra.mxu0 %v604
        %v685 = vpop.f32.mrf.mxu0
        %v686 = vadd.f32 %v575, %v685
        %687 = vmatmul.f32.gmra.mxu0 %v607
        %v688 = vpop.f32.mrf.mxu0
        %v689 = vadd.f32 %v580, %v688
        %690 = vmatmul.f32.gmra.mxu0 %v610
        %v691 = vpop.f32.mrf.mxu0
        %v692 = vadd.f32 %v585, %v691
        %693 = vdwg.mxu0
        %vm694 = vcmp.ge.f32.partialorder %v630, 0.0
        %vm695 = vcmp.ge.f32.partialorder %v671, 0.0
        %vm696 = vcmp.ge.f32.partialorder %v633, 0.0
        %vm697 = vcmp.ge.f32.partialorder %v674, 0.0
        %vm698 = vcmp.ge.f32.partialorder %v636, 0.0
        %vm699 = vcmp.ge.f32.partialorder %v677, 0.0
        %vm700 = vcmp.ge.f32.partialorder %v639, 0.0
        %vm701 = vcmp.ge.f32.partialorder %v680, 0.0
        %vm702 = vcmp.ge.f32.partialorder %v642, 0.0
        %vm703 = vcmp.ge.f32.partialorder %v683, 0.0
        %vm704 = vcmp.ge.f32.partialorder %v645, 0.0
        %vm705 = vcmp.ge.f32.partialorder %v686, 0.0
        %vm706 = vcmp.ge.f32.partialorder %v648, 0.0
        %vm707 = vcmp.ge.f32.partialorder %v689, 0.0
        %vm708 = vcmp.ge.f32.partialorder %v651, 0.0
        %vm709 = vcmp.ge.f32.partialorder %v692, 0.0
        %v710 = vstv %s401
        %v711 = vmul.f32 %v710, %v630
        %v712 = vmul.f32 %v710, %v671
        %v713 = vmul.f32 %v710, %v633
        %v714 = vmul.f32 %v710, %v674
        %v715 = vmul.f32 %v710, %v636
        %v716 = vmul.f32 %v710, %v677
        %v717 = vmul.f32 %v710, %v639
        %v718 = vmul.f32 %v710, %v680
        %v719 = vmul.f32 %v710, %v642
        %v720 = vmul.f32 %v710, %v683
        %v721 = vmul.f32 %v710, %v645
        %v722 = vmul.f32 %v710, %v686
        %v723 = vmul.f32 %v710, %v648
        %v724 = vmul.f32 %v710, %v689
        %v725 = vmul.f32 %v710, %v651
        %v726 = vmul.f32 %v710, %v692
        %v727 = vsel %vm694, %v630, %v711
        %v728 = vsel %vm695, %v671, %v712
        %v729 = vsel %vm696, %v633, %v713
        %v730 = vsel %vm697, %v674, %v714
        %v731 = vsel %vm698, %v636, %v715
        %v732 = vsel %vm699, %v677, %v716
        %v733 = vsel %vm700, %v639, %v717
        %v734 = vsel %vm701, %v680, %v718
        %v735 = vsel %vm702, %v642, %v719
        %v736 = vsel %vm703, %v683, %v720
        %v737 = vsel %vm704, %v645, %v721
        %v738 = vsel %vm705, %v686, %v722
        %v739 = vsel %vm706, %v648, %v723
        %v740 = vsel %vm707, %v689, %v724
        %v741 = vsel %vm708, %v651, %v725
        %v742 = vsel %vm709, %v692, %v726
        %v743 = vld [vmem:[%s6] sm:$0xff]
        %v744 = vld [vmem:[%s6 + $0x8] sm:$0xff]
        %v745 = vld [vmem:[%s6 + $0x10] sm:$0xff]
        %v746 = vld [vmem:[%s6 + $0x18] sm:$0xff]
        %v747 = vld [vmem:[%s7] sm:$0xff]
        %v748 = vld [vmem:[%s7 + $0x8] sm:$0xff]
        %v749 = vld [vmem:[%s7 + $0x10] sm:$0xff]
        %v750 = vld [vmem:[%s7 + $0x18] sm:$0xff]
        %752 = vset.pattern.permute.xlu0 0
        %753 = vperm.xlu0 %752, %v747
        %v754 = vpop.permute.xlu0 %753
        %757 = vset.pattern.permute.xlu0 0
        %758 = vperm.xlu0 %757, %v748
        %v759 = vpop.permute.xlu0 %758
        %762 = vset.pattern.permute.xlu0 0
        %763 = vperm.xlu0 %762, %v749
        %v764 = vpop.permute.xlu0 %763
        %767 = vset.pattern.permute.xlu0 0
        %768 = vperm.xlu0 %767, %v750
        %v769 = vpop.permute.xlu0 %768
        %vm771 = vcmask 523264
        %v773 = vsel %vm771, %v743, 0
        %v776 = vsel %vm771, %v744, 0
        %v779 = vsel %vm771, %v745, 0
        %v782 = vsel %vm771, %v746, 0
        %784 = vmatpush.msra.mxu0 0.0
        %785 = vmatpush.msra.mxu0 0.0
        %786 = vmatpush.msra.mxu0 0.0
        %787 = vmatpush.msra.mxu0 0.0
        %788 = vmatpush.msra.mxu0 0.0
        %789 = vmatpush.msra.mxu0 0.0
        %790 = vmatpush.msra.mxu0 0.0
        %791 = vmatpush.msra.mxu0 0.0
        %792 = vmatpush.msra.mxu0 %v741
        %793 = vmatpush.msra.mxu0 %v739
        %794 = vmatpush.msra.mxu0 %v737
        %795 = vmatpush.msra.mxu0 %v735
        %796 = vmatpush.msra.mxu0 %v733
        %797 = vmatpush.msra.mxu0 %v731
        %798 = vmatpush.msra.mxu0 %v729
        %799 = vmatpush.msra.mxu0 %v727
        %800 = vmatmul.f32.gmra.mxu0 %v773
        %v801 = vpop.f32.mrf.mxu0
        %v802 = vadd.f32 %v754, %v801
        %803 = vmatmul.f32.gmra.mxu0 %v776
        %v804 = vpop.f32.mrf.mxu0
        %v805 = vadd.f32 %v759, %v804
        %806 = vmatmul.f32.gmra.mxu0 %v779
        %v807 = vpop.f32.mrf.mxu0
        %v808 = vadd.f32 %v764, %v807
        %809 = vmatmul.f32.gmra.mxu0 %v782
        %v810 = vpop.f32.mrf.mxu0
        %v811 = vadd.f32 %v769, %v810
        %812 = vdwg.mxu0
        %813 = vmatpush.msra.mxu0 0.0
        %814 = vmatpush.msra.mxu0 0.0
        %815 = vmatpush.msra.mxu0 0.0
        %816 = vmatpush.msra.mxu0 0.0
        %817 = vmatpush.msra.mxu0 0.0
        %818 = vmatpush.msra.mxu0 0.0
        %819 = vmatpush.msra.mxu0 0.0
        %820 = vmatpush.msra.mxu0 0.0
        %821 = vmatpush.msra.mxu0 %v742
        %822 = vmatpush.msra.mxu0 %v740
        %823 = vmatpush.msra.mxu0 %v738
        %824 = vmatpush.msra.mxu0 %v736
        %825 = vmatpush.msra.mxu0 %v734
        %826 = vmatpush.msra.mxu0 %v732
        %827 = vmatpush.msra.mxu0 %v730
        %828 = vmatpush.msra.mxu0 %v728
        %829 = vmatmul.f32.gmra.mxu0 %v773
        %v830 = vpop.f32.mrf.mxu0
        %v831 = vadd.f32 %v754, %v830
        %832 = vmatmul.f32.gmra.mxu0 %v776
        %v833 = vpop.f32.mrf.mxu0
        %v834 = vadd.f32 %v759, %v833
        %835 = vmatmul.f32.gmra.mxu0 %v779
        %v836 = vpop.f32.mrf.mxu0
        %v837 = vadd.f32 %v764, %v836
        %838 = vmatmul.f32.gmra.mxu0 %v782
        %v839 = vpop.f32.mrf.mxu0
        %v840 = vadd.f32 %v769, %v839
        %841 = vdwg.mxu0
        %vm842 = vcmp.ge.f32.partialorder %v802, 0.0
        %vm843 = vcmp.ge.f32.partialorder %v831, 0.0
        %vm844 = vcmp.ge.f32.partialorder %v805, 0.0
        %vm845 = vcmp.ge.f32.partialorder %v834, 0.0
        %vm846 = vcmp.ge.f32.partialorder %v808, 0.0
        %vm847 = vcmp.ge.f32.partialorder %v837, 0.0
        %vm848 = vcmp.ge.f32.partialorder %v811, 0.0
        %vm849 = vcmp.ge.f32.partialorder %v840, 0.0
        %v850 = vstv %s402
        %v851 = vmul.f32 %v850, %v802
        %v852 = vmul.f32 %v850, %v831
        %v853 = vmul.f32 %v850, %v805
        %v854 = vmul.f32 %v850, %v834
        %v855 = vmul.f32 %v850, %v808
        %v856 = vmul.f32 %v850, %v837
        %v857 = vmul.f32 %v850, %v811
        %v858 = vmul.f32 %v850, %v840
        %v859 = vsel %vm842, %v802, %v851
        %v860 = vsel %vm843, %v831, %v852
        %v861 = vsel %vm844, %v805, %v853
        %v862 = vsel %vm845, %v834, %v854
        %v863 = vsel %vm846, %v808, %v855
        %v864 = vsel %vm847, %v837, %v856
        %v865 = vsel %vm848, %v811, %v857
        %v866 = vsel %vm849, %v840, %v858
        %v867 = vld [vmem:[%s8] sm:$0xff]
        %v868 = vld [vmem:[%s9] sm:$0xff]
        %870 = vset.pattern.permute.xlu0 0
        %871 = vperm.xlu0 %870, %v868
        %v872 = vpop.permute.xlu0 %871
        %v875 = vsel %vm587, %v867, 0
        %877 = vmatpush.msra.mxu0 0.0
        %878 = vmatpush.msra.mxu0 0.0
        %879 = vmatpush.msra.mxu0 0.0
        %880 = vmatpush.msra.mxu0 0.0
        %881 = vmatpush.msra.mxu0 0.0
        %882 = vmatpush.msra.mxu0 0.0
        %883 = vmatpush.msra.mxu0 0.0
        %884 = vmatpush.msra.mxu0 0.0
        %885 = vmatpush.msra.mxu0 0.0
        %886 = vmatpush.msra.mxu0 0.0
        %887 = vmatpush.msra.mxu0 0.0
        %888 = vmatpush.msra.mxu0 0.0
        %889 = vmatpush.msra.mxu0 %v865
        %890 = vmatpush.msra.mxu0 %v863
        %891 = vmatpush.msra.mxu0 %v861
        %892 = vmatpush.msra.mxu0 %v859
        %893 = vmatmul.f32.gmra.mxu0 %v875
        %v894 = vpop.f32.mrf.mxu0
        %v895 = vadd.f32 %v872, %v894
        %896 = vdwg.mxu0
        %897 = vmatpush.msra.mxu0 0.0
        %898 = vmatpush.msra.mxu0 0.0
        %899 = vmatpush.msra.mxu0 0.0
        %900 = vmatpush.msra.mxu0 0.0
        %901 = vmatpush.msra.mxu0 0.0
        %902 = vmatpush.msra.mxu0 0.0
        %903 = vmatpush.msra.mxu0 0.0
        %904 = vmatpush.msra.mxu0 0.0
        %905 = vmatpush.msra.mxu0 0.0
        %906 = vmatpush.msra.mxu0 0.0
        %907 = vmatpush.msra.mxu0 0.0
        %908 = vmatpush.msra.mxu0 0.0
        %909 = vmatpush.msra.mxu0 %v866
        %910 = vmatpush.msra.mxu0 %v864
        %911 = vmatpush.msra.mxu0 %v862
        %912 = vmatpush.msra.mxu0 %v860
        %913 = vmatmul.f32.gmra.mxu0 %v875
        %v914 = vpop.f32.mrf.mxu0
        %v915 = vadd.f32 %v872, %v914
        %916 = vdwg.mxu0
        %917 = vst [vmem:[%s397] sm:$0xff] %v895
        %918 = vst [vmem:[%s397 + $0x8] sm:$0xff] %v915
        %s919 = sand.u32 %s248, 1
        %s920 = scalar_lea.sflag [#allocation3], %s919
        %s921 = sand.u32 %s248, 1
        %s922 = smul.addr %s921, 16
        %s923 = scalar_lea.vmem [#allocation6], %s922
        // Predicated region
        $region88: #{tpu_custom_call.1} parent=78 // pred_check
          %p924 = pneg %p258
        $region89: #{tpu_custom_call.1} parent=78 // pred_check_branch
          %926 = sbr.rel (%p924) target = $region91
        $region90: #{tpu_custom_call.1} parent=78 // pred_region
          %s927 = smul.u32 2, %s25
          %929 = vsyncadd %s920, 0
          %s930 = smul.addr %s927, 8
          %s931 = scalar_lea.hbm %s10, %s930
          %s933 = sshll.u32 %s923, 4
          %s934 = int_to_ptr.vmem [resolvable:$true] %s933
          %s935 = sshll.u32 %s931, 4
          %s936 = int_to_ptr.hbm [resolvable:$true] %s935
          %938 = dma.vmem_to_hbm [thread:$0]  %s934, 256, %s936, %s920
        $region91: #{tpu_custom_call.1} parent=78 // pred_fallthru
          _
      $region79: #{tpu_custom_call.1} parent=5 // pred_fallthru
        _
      %p939 = scmp.le.s32.totalorder 2, %s20
      // Predicated region
      $region92: #{tpu_custom_call.1} parent=5 // pred_check
        %p940 = pneg %p939
      $region93: #{tpu_custom_call.1} parent=5 // pred_check_branch
        %942 = sbr.rel (%p940) target = $region95
      $region94: #{tpu_custom_call.1} parent=5 // pred_region
        %s943 = ssub.s32 %s20, 2
        // Predicated region
        $region96: #{tpu_custom_call.1} parent=94 // pred_check
          %p944 = pneg %p264
        $region97: #{tpu_custom_call.1} parent=94 // pred_check_branch
          %946 = sbr.rel (%p944) target = $region99
        $region98: #{tpu_custom_call.1} parent=94 // pred_region
          %s947 = sand.u32 %s249, 1
          %s948 = scalar_lea.sflag [#allocation3], %s947
          %s949 = sand.u32 %s249, 1
          %s950 = smul.addr %s949, 16
          %s951 = scalar_lea.vmem [#allocation6], %s950
          %953 = dma.done %s948, 256
        $region99: #{tpu_custom_call.1} parent=94 // pred_fallthru
          _
      $region95: #{tpu_custom_call.1} parent=5 // pred_fallthru
        _
    $region6: #{tpu_custom_call.1} parent=1 // loop_footer
      %s24 = sadd.s32 1, %s20
    $region7: #{tpu_custom_call.1} parent=1 // loop_footer_branch
      %19 = sbr.rel target = $region3
    $region8: #{tpu_custom_call.1} parent=1 // loop_exit
      _
    %954 = vsyncpa [#allocation3], 1
    %s955 = scalar_lea.sflag [#allocation3], 1
    %956 = vsyncpa %s955, 1
    %957 = vsyncpa [#allocation4], 1
    %s958 = scalar_lea.sflag [#allocation4], 1
    %959 = vsyncpa %s958, 1

</llo_original>
